<compile_context>
chip_gen: v7x
topology: tpu7x:2x2x1
jax: 0.10.0
libtpu: 0.0.40
codegen_flags: <defaults>
</compile_context>

<pallas_src>
import math

import jax
import jax.numpy as jnp
import numpy as np
from jax.experimental import pallas as pl
from jax.experimental.pallas import tpu as pltpu

B, S, D = 2, 8, 32          # batch, sequence length, d_model
MAX_LEN = 5000              # max_len of the registered pe buffer
DROPOUT_P = 0.1             # module arg; eval-mode dropout == identity
LANES = 128


def make_pe_buffer(max_len=MAX_LEN, d_model=D):
    """Sinusoidal PE table, exactly as PositionalEncoding.__init__ (float32)."""
    position = np.arange(0.0, max_len, dtype=np.float32)[:, None]
    div_term = np.exp(np.arange(0.0, d_model, 2, dtype=np.float32)
                      * np.float32(-(math.log(10000.0) / d_model)))
    pe = np.zeros((max_len, d_model), dtype=np.float32)
    pe[:, 0::2] = np.sin(position * div_term)
    pe[:, 1::2] = np.cos(position * div_term)
    return pe                                     # numpy (max_len, d_model)


_PE_NP = make_pe_buffer()


def _make_pe_slab(batch, seq, d_model):
    """PE slice tiled over batch and laid out as a lane-dense (rows, 128) slab.

    Matches x.reshape(rows, 128) elementwise, so the kernel add is a pure
    same-shape vreg add (no broadcast). Built once at init (registered-buffer
    semantics) -> zero per-call slice/reshape/tiling work.
    """
    flat = np.broadcast_to(_PE_NP[:seq].reshape(1, seq * d_model),
                           (batch, seq * d_model)).reshape(-1)
    assert flat.size % LANES == 0
    return jnp.asarray(flat.reshape(flat.size // LANES, LANES))


PE_SLAB = _make_pe_slab(B, S, D)                  # (4, 128) f32 constant


# ---- Pallas kernel -----------------------------------------------------------
def pos_enc_kernel(x_ref, pe_ref, out_ref):
    # x_ref, pe_ref, out_ref: identical (rows, 128) lane-dense VMEM slabs.
    out_ref[...] = x_ref[...] + pe_ref[...]
    # nn.Dropout(p) in eval mode is identity -> nothing more to do.
    # TODO(synk): train-mode stochastic dropout (p=0.1) would need
    # pltpu.prng_seed + pltpu.prng_random_bits masking with 1/(1-p) scaling.


def positional_encoding_forward(x):
    """x: (B, S, D) f32. Returns dropout_eval(x + pe[:S]) of shape (B, S, D)."""
    Bx, Sx, Dx = x.shape
    rows = (Bx * Sx * Dx) // LANES
    x_slab = x.reshape(rows, LANES)               # free XLA bitcast-reshape

    out_slab = pl.pallas_call(
        pos_enc_kernel,
        out_shape=jax.ShapeDtypeStruct((rows, LANES), x.dtype),
        # Gridless: whole-array blocks resident in VMEM, no index_map, no grid.
        in_specs=[pl.BlockSpec(memory_space=pltpu.MemorySpace.VMEM),
                  pl.BlockSpec(memory_space=pltpu.MemorySpace.VMEM)],
        out_specs=pl.BlockSpec(memory_space=pltpu.MemorySpace.VMEM),
        input_output_aliases={0: 0},              # output reuses x's buffer
    )(x_slab, PE_SLAB)
    return out_slab.reshape(Bx, Sx, Dx)


if __name__ == "__main__":
    key = jax.random.PRNGKey(0)
    x = jax.random.normal(key, (B, S, D), jnp.float32)

    # Pure reference computed BEFORE the call (x's buffer is donated below).
    ref = np.asarray(x) + _PE_NP[:S][None, :, :]

    fwd = jax.jit(positional_encoding_forward, donate_argnums=0)
    out = jax.block_until_ready(fwd(x))

    out_np = np.asarray(out)
    assert out_np.shape == (B, S, D)
    assert np.all(np.isfinite(out_np))
    assert np.allclose(out_np, ref, atol=1e-6, rtol=1e-6)

    print("KERNEL_OK")
</pallas_src>

<mosaic_0001>
module attributes {stable_mosaic.version = 11 : i64} {
  func.func @pos_enc_kernel(%arg0: memref<4x128xf32, #tpu.memory_space<vmem>>, %arg1: memref<4x128xf32, #tpu.memory_space<vmem>>, %arg2: memref<4x128xf32, #tpu.memory_space<vmem>>) attributes {dimension_semantics = [], scalar_prefetch = 0 : i64, scratch_operands = 0 : i64, tpu.core_type = #tpu.core_type<tc>} {
    %c0 = arith.constant 0 : index
    %c0_0 = arith.constant 0 : index
    %0 = vector.load %arg0[%c0, %c0_0] : memref<4x128xf32, #tpu.memory_space<vmem>>, vector<4x128xf32>
    %c0_1 = arith.constant 0 : index
    %c0_2 = arith.constant 0 : index
    %1 = vector.load %arg1[%c0_1, %c0_2] : memref<4x128xf32, #tpu.memory_space<vmem>>, vector<4x128xf32>
    %2 = arith.addf %0, %1 : vector<4x128xf32>
    %c0_3 = arith.constant 0 : index
    %c0_4 = arith.constant 0 : index
    %3 = vector.load %arg2[%c0_3, %c0_4] : memref<4x128xf32, #tpu.memory_space<vmem>>, vector<4x128xf32>
    tpu.vector_store %arg2[%c0_3, %c0_4], %2 {strides = array<i32>} : memref<4x128xf32, #tpu.memory_space<vmem>>, vector<4x128xf32>,
    return
  }
}

</mosaic_0001>

<llo_original>
// kernel: positional_encoding_forward.1
$region0: #{positional_encoding_forward.1}
  #allocation0 [shape = 'u32[]', space=smem, size = 0x4, offset = 0x4, fixed_abs, tag = 'smem constant byte address 0x4 - core index']
  #allocation1 [shape = 'u32[144,128]{1,0:T(1,128)}', space=vmem, size = 0x12000, scoped, tag = 'internal scratch']
  %s0 = inlined_call_operand.vmem [shape: f32[4,128], index: 0, kind: input, shape index: {}, may-alias: {0,2}]
  %s1 = inlined_call_operand.vmem [shape: f32[4,128], index: 1, kind: input, shape index: {}]
  %s2 = inlined_call_operand.vmem [shape: f32[4,128], index: 2, kind: output, shape index: {}, may-alias: {0,2}]
  %s3 = sld [smem:[#allocation0]]
  $region18: #{positional_encoding_forward.1} parent=0
    _
  %s5 = ssub.s32 1, %s3
  %s6 = scalar_select 0, %s5, %s3
  // Predicated region
  $region2: #{positional_encoding_forward.1} parent=0 // pred_check
    _
  $region3: #{positional_encoding_forward.1} parent=0 // pred_check_branch
    %8 = sbr.rel (0) target = $region5
  $region4: #{positional_encoding_forward.1} parent=0 // pred_region
    _
  $region5: #{positional_encoding_forward.1} parent=0 // pred_fallthru
    _
  // Predicated region
  $region6: #{positional_encoding_forward.1} parent=0 // pred_check
    _
  $region7: #{positional_encoding_forward.1} parent=0 // pred_check_branch
    %10 = sbr.rel (0) target = $region9
  $region8: #{positional_encoding_forward.1} parent=0 // pred_region
    _
  $region9: #{positional_encoding_forward.1} parent=0 // pred_fallthru
    _
  %v11 = vld [vmem:[%s0] sm:$0xf]
  %v12 = vld [vmem:[%s1] sm:$0xf]
  %v13 = vadd.f32 %v11, %v12
  %14 = vst [vmem:[%s2] sm:$0xf] %v13
  // Predicated region
  $region10: #{positional_encoding_forward.1} parent=0 // pred_check
    _
  $region11: #{positional_encoding_forward.1} parent=0 // pred_check_branch
    %16 = sbr.rel (0) target = $region13
  $region12: #{positional_encoding_forward.1} parent=0 // pred_region
    _
  $region13: #{positional_encoding_forward.1} parent=0 // pred_fallthru
    _
  // Predicated region
  $region14: #{positional_encoding_forward.1} parent=0 // pred_check
    _
  $region15: #{positional_encoding_forward.1} parent=0 // pred_check_branch
    %18 = sbr.rel (0) target = $region17
  $region16: #{positional_encoding_forward.1} parent=0 // pred_region
    _
  $region17: #{positional_encoding_forward.1} parent=0 // pred_fallthru
    _

</llo_original>
